<compile_context>
chip_gen: v6e
topology: v6e:2x2x1
jax: 0.10.0
libtpu: 0.0.40
codegen_flags: <defaults>
</compile_context>

<pallas_src>
import functools

import jax
import jax.numpy as jnp
from jax import lax
from jax.experimental import pallas as pl
from jax.experimental.pallas import tpu as pltpu

LANE = 128
TM_MAX = 4096  # rows per block: (4096, 128) f32 = 2 MiB per input per buffer

_CORE_PARALLEL = getattr(pltpu, "CORE_PARALLEL", "parallel")
_ARBITRARY = getattr(pltpu, "ARBITRARY", "arbitrary")


def _round_down(x, m):
    return (x // m) * m


def _tensorcores_per_chip():
    """v7x has 2 TensorCores per chip; v5e/v6e have 1.

    The 2-way grid split is only emitted when the hardware can actually shard
    the leading grid axis across cores — on single-TC chips it is pure
    overhead (duplicated DMA + forced tail masking).
    """
    try:
        kind = jax.devices()[0].device_kind.lower()
    except Exception:  # pragma: no cover - defensive
        return 1
    return 2 if "v7" in kind else 1


def _focal_kernel(*refs, alpha, beta, inner, rows, row_blocks, tm,
                  has_mask, partial_last, need_guard, two_d):
    if has_mask:
        pred_ref, gt_ref, mask_ref, out_ref = refs
    else:
        pred_ref, gt_ref, out_ref = refs
        mask_ref = None

    if two_d:
        c = pl.program_id(0)          # sharded across TensorCores (v7x)
        i = pl.program_id(1)          # accumulating ("arbitrary") axis
        blk = c * inner + i           # logical row-block index
    else:
        i = pl.program_id(0)
        blk = i

    @pl.when(i == 0)
    def _init():
        out_ref[...] = jnp.zeros_like(out_ref)

    def compute(masked):
        pred = pred_ref[...].astype(jnp.float32)
        gt = gt_ref[...].astype(jnp.float32)

        if masked:
            # Only the (single) partial last block pays for this: sanitize the
            # rows past the end of the array so log/pow stay finite and the
            # padded elements select weight == 0 below.
            row_idx = lax.broadcasted_iota(jnp.int32, (tm, LANE), 0) + blk * tm
            valid = row_idx < rows
            pred = jnp.where(valid, pred, 0.5)
            gt = jnp.where(valid, gt, 2.0)   # neither pos nor neg nor counted
        else:
            valid = None

        pos = gt == 1.0
        one_m_pred = 1.0 - pred
        # pos / neg elements are mutually exclusive -> one log per element.
        lg = jnp.log(jnp.where(pos, pred, one_m_pred))
        pw = lax.integer_pow(jnp.where(pos, one_m_pred, pred), alpha)
        neg_w = lax.integer_pow(1.0 - gt, beta)
        # Fused weight: 1 for positives, (1-gt)^beta for negatives (gt < 1),
        # 0 otherwise (gt > 1, including the padded rows above).
        weight = jnp.where(pos, 1.0, jnp.where(gt < 1.0, neg_w, 0.0))
        pos_f = pos.astype(jnp.float32)

        if has_mask:
            m = mask_ref[...].astype(jnp.float32)
            if masked:
                m = jnp.where(valid, m, 0.0)   # padding may hold garbage/NaN
            weight = weight * m
            pos_f = pos_f * m

        loss = lg * pw * weight

        def fold(x):
            # (tm, 128) -> (8, 128) partial sums: pure VPU vreg adds, no XLU
            # cross-lane reduce inside the hot loop.
            return x.reshape(tm // 8, 8, LANE).sum(axis=0)

        out_ref[0, 0] += fold(loss)
        out_ref[0, 1] += fold(pos_f)

    if not need_guard:
        compute(masked=False)
    else:
        last_full = row_blocks - 1 if partial_last else row_blocks

        @pl.when(blk < last_full)
        def _fast():
            compute(masked=False)

        if partial_last:
            @pl.when(blk == row_blocks - 1)
            def _tail():
                compute(masked=True)


def _focal_partial_sums(inputs, rows, has_mask, alpha, beta, tm):
    """Pallas streaming reduction over (rows, 128) inputs.

    Returns (loss_sum, pos_count) as f32 scalars (to be negated / normalized
    by the caller)."""
    row_blocks = pl.cdiv(rows, tm)
    partial_last = (rows % tm) != 0

    use_split = _tensorcores_per_chip() >= 2 and row_blocks > 1
    if use_split:
        ncores = 2
        inner = pl.cdiv(row_blocks, ncores)
        grid = (ncores, inner)

        def row_map(c, i):
            # Clamp so no DMA window is fully out of bounds; duplicated /
            # partial blocks are handled (skipped / masked) inside the kernel.
            return (jnp.minimum(c * inner + i, row_blocks - 1), 0)

        out_specs = pl.BlockSpec((1, 2, 8, LANE), lambda c, i: (c, 0, 0, 0))
        dims = (_CORE_PARALLEL, _ARBITRARY)
        dup = ncores * inner > row_blocks
        two_d = True
    else:
        ncores = 1
        inner = row_blocks
        grid = (row_blocks,)

        def row_map(i):
            return (i, 0)

        out_specs = pl.BlockSpec((1, 2, 8, LANE), lambda i: (0, 0, 0, 0))
        dims = (_ARBITRARY,)
        dup = False
        two_d = False

    need_guard = partial_last or dup
    in_specs = [pl.BlockSpec((tm, LANE), row_map) for _ in inputs]

    n_elem = rows * LANE
    bytes_in = sum(int(x.size) * x.dtype.itemsize for x in inputs)
    cost = pl.CostEstimate(
        flops=16 * n_elem,
        transcendentals=n_elem,
        bytes_accessed=bytes_in + ncores * 2 * 8 * LANE * 4,
    )

    kernel = functools.partial(
        _focal_kernel, alpha=alpha, beta=beta, inner=inner, rows=rows,
        row_blocks=row_blocks, tm=tm, has_mask=has_mask,
        partial_last=partial_last, need_guard=need_guard, two_d=two_d)

    partial = pl.pallas_call(
        kernel,
        out_shape=jax.ShapeDtypeStruct((ncores, 2, 8, LANE), jnp.float32),
        grid_spec=pltpu.PrefetchScalarGridSpec(
            num_scalar_prefetch=0,
            grid=grid,
            in_specs=in_specs,
            out_specs=out_specs,
        ),
        compiler_params=pltpu.CompilerParams(
            dimension_semantics=dims,
            vmem_limit_bytes=32 * 1024 * 1024,
        ),
        cost_estimate=cost,
    )(*inputs)

    sums = partial.sum(axis=(0, 2, 3))  # (2,): loss_sum, pos_count
    return sums[0], sums[1]


def focal_loss(pred, gt, mask=None, alpha=2, beta=4, *, tm_max=TM_MAX):
    """pred, gt: (B, C, H, W) probabilities / heatmap targets; mask optional."""
    if float(alpha) != int(alpha) or float(beta) != int(beta):
        raise ValueError("alpha/beta must be integral (float exponents lower "
                         "pow to exp/log and flood the EUP slot)")
    alpha, beta = int(alpha), int(beta)

    total = int(pred.size)
    has_mask = mask is not None

    pred_flat = pred.reshape(-1)
    gt_flat = gt.reshape(-1)
    if has_mask:
        if mask.shape != pred.shape:
            # TODO(synk): broadcast smaller masks via the index_map instead of
            # materializing a full-size copy.
            mask = jnp.broadcast_to(mask, pred.shape)
        mask_flat = mask.reshape(-1)                 # native dtype, no f32 cast
        inputs_flat = [pred_flat, gt_flat, mask_flat]
    else:
        inputs_flat = [pred_flat, gt_flat]

    # Sublane packing of the narrowest input dtype (f32 -> 8, bf16 -> 16,
    # int8/bool -> 32); row tiles must be multiples of it.
    sub = max(max(32 // jnp.dtype(x.dtype).itemsize for x in inputs_flat), 8)

    rows_main = _round_down(total // LANE, sub)
    main_elems = rows_main * LANE

    loss_sum = jnp.float32(0.0)
    num_pos = jnp.float32(0.0)

    if rows_main > 0:
        if main_elems == total:
            mains = [x.reshape(rows_main, LANE) for x in inputs_flat]
        else:
            # 128x8-aligned prefix goes through the kernel; the small
            # (< sub*128 element) remainder is reduced in plain JAX below —
            # cheaper than a full-array jnp.pad copy.
            mains = [x[:main_elems].reshape(rows_main, LANE)
                     for x in inputs_flat]
        tm = min(max(_round_down(tm_max, sub), sub), rows_main)
        ls, npos = _focal_partial_sums(mains, rows_main, has_mask, alpha, beta, tm)
        loss_sum = loss_sum + ls
        num_pos = num_pos + npos

    if main_elems != total:
        tp = pred_flat[main_elems:].astype(jnp.float32)
        tg = gt_flat[main_elems:].astype(jnp.float32)
        pos_i = (tg == 1.0).astype(jnp.float32)
        neg_i = (tg < 1.0).astype(jnp.float32)
        if has_mask:
            tmsk = mask_flat[main_elems:].astype(jnp.float32)
            pos_i = pos_i * tmsk
            neg_i = neg_i * tmsk
        neg_w = (1.0 - tg) ** beta
        pos_l = jnp.log(tp) * (1.0 - tp) ** alpha * pos_i
        neg_l = jnp.log(1.0 - tp) * tp ** alpha * neg_w * neg_i
        loss_sum = loss_sum + pos_l.sum() + neg_l.sum()
        num_pos = num_pos + pos_i.sum()

    den = jnp.where(num_pos == 0.0, 1.0, num_pos)
    return jnp.where(num_pos == 0.0, -loss_sum, -loss_sum / den)


def focal_loss_ref(pred, gt, mask=None, alpha=2, beta=4):
    """Pure-JAX reference mirroring the PyTorch module."""
    pred = pred.astype(jnp.float32)
    gt = gt.astype(jnp.float32)
    pos_inds = (gt == 1.0).astype(jnp.float32)
    neg_inds = (gt < 1.0).astype(jnp.float32)
    if mask is not None:
        pos_inds = pos_inds * mask
        neg_inds = neg_inds * mask
    neg_weights = (1.0 - gt) ** beta
    pos_loss = jnp.log(pred) * (1.0 - pred) ** alpha * pos_inds
    neg_loss = jnp.log(1.0 - pred) * pred ** alpha * neg_weights * neg_inds
    num_pos = pos_inds.sum()
    pos_loss = pos_loss.sum()
    neg_loss = neg_loss.sum()
    return jnp.where(num_pos == 0.0, -neg_loss,
                     -(pos_loss + neg_loss) / jnp.where(num_pos == 0.0, 1.0, num_pos))


if __name__ == "__main__":
    key = jax.random.PRNGKey(0)
    k1, k2, k3, k4, k5, k6, k7 = jax.random.split(key, 7)

    def make_inputs(kp, ku, shape, thresh):
        p = jax.nn.sigmoid(jax.random.normal(kp, shape, jnp.float32))
        p = jnp.clip(p, 1e-4, 1.0 - 1e-4)
        u = jax.random.uniform(ku, shape, jnp.float32)
        g = jnp.where(u > thresh, 1.0, u * 0.9)
        return p, g

    # Case 1: basic, no mask — (B, C, H, W) = (2, 4, 16, 16)
    pred, gt = make_inputs(k1, k2, (2, 4, 16, 16), 0.97)
    out1 = jax.block_until_ready(focal_loss(pred, gt))
    ref1 = focal_loss_ref(pred, gt)
    assert jnp.allclose(out1, ref1, rtol=1e-3, atol=1e-3), (out1, ref1)

    # Case 2: with a mask (exercises the 3-input kernel variant)
    m = (jax.random.uniform(k3, (2, 4, 16, 16), jnp.float32) > 0.5).astype(jnp.float32)
    out2 = jax.block_until_ready(focal_loss(pred, gt, mask=m))
    ref2 = focal_loss_ref(pred, gt, mask=m)
    assert jnp.allclose(out2, ref2, rtol=1e-3, atol=1e-3), (out2, ref2)

    # Case 3: larger heatmap — single big block, no tail.
    pred3, gt3 = make_inputs(k4, k5, (3, 8, 96, 128), 0.995)
    out3 = jax.block_until_ready(focal_loss(pred3, gt3))
    ref3 = focal_loss_ref(pred3, gt3)
    assert jnp.allclose(out3, ref3, rtol=1e-3, atol=1e-3), (out3, ref3)

    # Case 4: small tm_max forces multi-block grid with a partial last block
    # (exercises the pl.when-guarded masked tail path, and the 2-way core
    # split when running on a multi-TensorCore chip).
    pred4, gt4 = make_inputs(k6, k7, (2, 4, 72, 128), 0.99)
    out4 = jax.block_until_ready(focal_loss(pred4, gt4, tm_max=256))
    ref4 = focal_loss_ref(pred4, gt4)
    assert jnp.allclose(out4, ref4, rtol=1e-3, atol=1e-3), (out4, ref4)

    # Case 5: element count not a multiple of 128*8 — exercises the
    # kernel-prefix + plain-JAX-tail split (no full-array pad copy).
    pred5, gt5 = make_inputs(k1, k5, (2, 3, 13, 16), 0.97)
    m5 = (jax.random.uniform(k3, (2, 3, 13, 16), jnp.float32) > 0.5).astype(jnp.float32)
    out5 = jax.block_until_ready(focal_loss(pred5, gt5, mask=m5))
    ref5 = focal_loss_ref(pred5, gt5, mask=m5)
    assert jnp.allclose(out5, ref5, rtol=1e-3, atol=1e-3), (out5, ref5)

    print("KERNEL_OK")
</pallas_src>

<mosaic_0001>
module attributes {stable_mosaic.version = 11 : i64} {
  func.func @_focal_kernel(%arg0: i32, %arg1: memref<16x128xf32, #tpu.memory_space<vmem>>, %arg2: memref<16x128xf32, #tpu.memory_space<vmem>>, %arg3: memref<1x2x8x128xf32, #tpu.memory_space<vmem>>) attributes {dimension_semantics = [#tpu.dimension_semantics<arbitrary>], iteration_bounds = array<i64: 1>, scalar_prefetch = 0 : i64, scratch_operands = 0 : i64, tpu.core_type = #tpu.core_type<tc>, window_params = [{transform_indices = @transform_0, window_bounds = array<i64: 16, 128>}, {transform_indices = @transform_1, window_bounds = array<i64: 16, 128>}, {pipeline_mode = #tpu.pipeline_mode<synchronous>, transform_indices = @transform_2, window_bounds = array<i64: 1, 2, 8, 128>}]} {
    %c0_i32 = arith.constant 0 : i32
    %0 = arith.cmpi eq, %arg0, %c0_i32 : i32
    %1 = arith.extui %0 : i1 to i32
    %c0_i32_0 = arith.constant 0 : i32
    %2 = arith.cmpi ne, %1, %c0_i32_0 : i32
    scf.if %2 {
      %cst_26 = arith.constant 0.000000e+00 : f32
      %43 = vector.broadcast %cst_26 : f32 to vector<1x2x8x128xf32>
      %c0_27 = arith.constant 0 : index
      %c0_28 = arith.constant 0 : index
      %c0_29 = arith.constant 0 : index
      %c0_30 = arith.constant 0 : index
      %44 = vector.load %arg3[%c0_27, %c0_28, %c0_29, %c0_30] : memref<1x2x8x128xf32, #tpu.memory_space<vmem>>, vector<1x2x8x128xf32>
      tpu.vector_store %arg3[%c0_27, %c0_28, %c0_29, %c0_30], %43 {strides = array<i32>} : memref<1x2x8x128xf32, #tpu.memory_space<vmem>>, vector<1x2x8x128xf32>,
    } else {
    }
    %c0 = arith.constant 0 : index
    %c0_1 = arith.constant 0 : index
    %3 = vector.load %arg1[%c0, %c0_1] : memref<16x128xf32, #tpu.memory_space<vmem>>, vector<16x128xf32>
    %c0_2 = arith.constant 0 : index
    %c0_3 = arith.constant 0 : index
    %4 = vector.load %arg2[%c0_2, %c0_3] : memref<16x128xf32, #tpu.memory_space<vmem>>, vector<16x128xf32>
    %cst = arith.constant 1.000000e+00 : f32
    %5 = vector.broadcast %cst : f32 to vector<16x128xf32>
    %6 = arith.cmpf oeq, %4, %5 : vector<16x128xf32>
    %cst_4 = arith.constant 1.000000e+00 : f32
    %7 = vector.broadcast %cst_4 : f32 to vector<16x128xf32>
    %8 = arith.subf %7, %3 : vector<16x128xf32>
    %9 = arith.select %6, %3, %8 : vector<16x128xi1>, vector<16x128xf32>
    %10 = math.log %9 : vector<16x128xf32>
    %11 = arith.select %6, %8, %3 : vector<16x128xi1>, vector<16x128xf32>
    %12 = arith.mulf %11, %11 : vector<16x128xf32>
    %cst_5 = arith.constant 1.000000e+00 : f32
    %13 = vector.broadcast %cst_5 : f32 to vector<16x128xf32>
    %14 = arith.subf %13, %4 : vector<16x128xf32>
    %15 = arith.mulf %14, %14 : vector<16x128xf32>
    %16 = arith.mulf %15, %15 : vector<16x128xf32>
    %cst_6 = arith.constant 1.000000e+00 : f32
    %17 = vector.broadcast %cst_6 : f32 to vector<16x128xf32>
    %18 = arith.cmpf olt, %4, %17 : vector<16x128xf32>
    %cst_7 = arith.constant 0.000000e+00 : f32
    %19 = vector.broadcast %cst_7 : f32 to vector<16x128xf32>
    %20 = arith.select %18, %16, %19 : vector<16x128xi1>, vector<16x128xf32>
    %cst_8 = arith.constant 1.000000e+00 : f32
    %21 = vector.broadcast %cst_8 : f32 to vector<16x128xf32>
    %22 = arith.select %6, %21, %20 : vector<16x128xi1>, vector<16x128xf32>
    %23 = arith.extui %6 : vector<16x128xi1> to vector<16x128xi32>
    %24 = arith.sitofp %23 : vector<16x128xi32> to vector<16x128xf32>
    %25 = arith.mulf %10, %12 : vector<16x128xf32>
    %26 = arith.mulf %25, %22 : vector<16x128xf32>
    %c0_9 = arith.constant 0 : index
    %c0_10 = arith.constant 0 : index
    %c0_11 = arith.constant 0 : index
    %c0_12 = arith.constant 0 : index
    %27 = vector.load %arg3[%c0_9, %c0_10, %c0_11, %c0_12] : memref<1x2x8x128xf32, #tpu.memory_space<vmem>>, vector<1x1x8x128xf32>
    %28 = vector.shape_cast %27 : vector<1x1x8x128xf32> to vector<8x128xf32>
    %29 = vector.shape_cast %26 : vector<16x128xf32> to vector<2x8x128xf32>
    %cst_13 = arith.constant dense<0.000000e+00> : vector<8x128xf32>
    %30 = vector.multi_reduction <add>, %29, %cst_13 [0] : vector<2x8x128xf32> to vector<8x128xf32>
    %31 = arith.addf %28, %30 : vector<8x128xf32>
    %c0_14 = arith.constant 0 : index
    %c0_15 = arith.constant 0 : index
    %c0_16 = arith.constant 0 : index
    %c0_17 = arith.constant 0 : index
    %32 = vector.load %arg3[%c0_14, %c0_15, %c0_16, %c0_17] : memref<1x2x8x128xf32, #tpu.memory_space<vmem>>, vector<1x1x8x128xf32>
    %33 = vector.shape_cast %32 : vector<1x1x8x128xf32> to vector<8x128xf32>
    %34 = vector.shape_cast %31 : vector<8x128xf32> to vector<1x1x8x128xf32>
    tpu.vector_store %arg3[%c0_14, %c0_15, %c0_16, %c0_17], %34 {strides = array<i32>} : memref<1x2x8x128xf32, #tpu.memory_space<vmem>>, vector<1x1x8x128xf32>,
    %c0_18 = arith.constant 0 : index
    %c1 = arith.constant 1 : index
    %c0_19 = arith.constant 0 : index
    %c0_20 = arith.constant 0 : index
    %35 = vector.load %arg3[%c0_18, %c1, %c0_19, %c0_20] : memref<1x2x8x128xf32, #tpu.memory_space<vmem>>, vector<1x1x8x128xf32>
    %36 = vector.shape_cast %35 : vector<1x1x8x128xf32> to vector<8x128xf32>
    %37 = vector.shape_cast %24 : vector<16x128xf32> to vector<2x8x128xf32>
    %cst_21 = arith.constant dense<0.000000e+00> : vector<8x128xf32>
    %38 = vector.multi_reduction <add>, %37, %cst_21 [0] : vector<2x8x128xf32> to vector<8x128xf32>
    %39 = arith.addf %36, %38 : vector<8x128xf32>
    %c0_22 = arith.constant 0 : index
    %c1_23 = arith.constant 1 : index
    %c0_24 = arith.constant 0 : index
    %c0_25 = arith.constant 0 : index
    %40 = vector.load %arg3[%c0_22, %c1_23, %c0_24, %c0_25] : memref<1x2x8x128xf32, #tpu.memory_space<vmem>>, vector<1x1x8x128xf32>
    %41 = vector.shape_cast %40 : vector<1x1x8x128xf32> to vector<8x128xf32>
    %42 = vector.shape_cast %39 : vector<8x128xf32> to vector<1x1x8x128xf32>
    tpu.vector_store %arg3[%c0_22, %c1_23, %c0_24, %c0_25], %42 {strides = array<i32>} : memref<1x2x8x128xf32, #tpu.memory_space<vmem>>, vector<1x1x8x128xf32>,
    return
  }
  func.func @transform_0(%arg0: i32) -> (i32, i32) {
    %c0_i32 = arith.constant 0 : i32
    %c0_i32_0 = arith.constant 0 : i32
    return %arg0, %c0_i32 : i32, i32
  }
  func.func @transform_1(%arg0: i32) -> (i32, i32) {
    %c0_i32 = arith.constant 0 : i32
    %c0_i32_0 = arith.constant 0 : i32
    return %arg0, %c0_i32 : i32, i32
  }
  func.func @transform_2(%arg0: i32) -> (i32, i32, i32, i32) {
    %c0_i32 = arith.constant 0 : i32
    %c0_i32_0 = arith.constant 0 : i32
    %c0_i32_1 = arith.constant 0 : i32
    %c0_i32_2 = arith.constant 0 : i32
    %c0_i32_3 = arith.constant 0 : i32
    return %c0_i32, %c0_i32_0, %c0_i32_1, %c0_i32_2 : i32, i32, i32, i32
  }
}

</mosaic_0001>

<llo_original>
// kernel: tpu_custom_call.1
$region0: #{tpu_custom_call.1}
  #allocation0 [shape = 'u32[]', space=smem, size = 0x4, offset = 0x4, fixed_abs, tag = 'smem constant byte address 0x4 - core index']
  #allocation1 [shape = 'u32[144,128]{1,0:T(1,128)}', space=vmem, size = 0x12000, scoped, tag = 'internal scratch']
  %s0 = inlined_call_operand.hbm [shape: f32[16,128], index: 0, kind: input, shape index: {}]
  %s1 = inlined_call_operand.hbm [shape: f32[16,128], index: 1, kind: input, shape index: {}]
  %s2 = inlined_call_operand.hbm [shape: f32[1,2,8,128], index: 2, kind: output, shape index: {}]
  %s3 = sld [smem:[#allocation0]]
  $region30: #{tpu_custom_call.1} parent=0
    _
  %s5 = ssub.s32 1, %s3
  %s6 = scalar_select 0, %s5, %s3
  $region1: #{tpu_custom_call.1} parent=0
    #allocation2 [shape = 'u8[8192]{0}', space=vmem, size = 0x2000, scoped, tag = 'input window, operand 0, single buffered']
    #allocation3 [shape = 's32[1]{0}', space=sflag, size = 0x4, scoped, tag = 'scoped memory for tpu_custom_call.1']
    #allocation4 [shape = 's32[1]{0}', space=sflag, size = 0x4, scoped, tag = 'scoped memory for tpu_custom_call.1']
    #allocation5 [shape = 'u8[8192]{0}', space=vmem, size = 0x2000, scoped, tag = 'input window, operand 1, single buffered']
    #allocation6 [shape = 's32[1]{0}', space=sflag, size = 0x4, scoped, tag = 'scoped memory for tpu_custom_call.1']
    #allocation7 [shape = 'u8[8192]{0}', space=vmem, size = 0x2000, scoped, tag = 'output window, operand 0, single buffered']
    %7 = vsyncpa [#allocation3], 0
    %8 = vsyncpa [#allocation6], 0
    %9 = vsyncpa [#allocation4], 0
    // Predicated region
    $region2: #{tpu_custom_call.1} parent=1 // pred_check
      _
    $region3: #{tpu_custom_call.1} parent=1 // pred_check_branch
      %11 = sbr.rel (0) target = $region5
    $region4: #{tpu_custom_call.1} parent=1 // pred_region
      %s13 = ssub.s32 256, 256
      %14 = vsyncadd [#allocation3], %s13
      %s15 = sshll.u32 [#allocation2], 4
      %s16 = int_to_ptr.vmem [resolvable:$true] %s15
      %21 = dma.hbm_to_vmem [thread:$0]  %s0, 256, %s16, [#allocation3], 128, 128, 8
    $region5: #{tpu_custom_call.1} parent=1 // pred_fallthru
      _
    // Predicated region
    $region6: #{tpu_custom_call.1} parent=1 // pred_check
      _
    $region7: #{tpu_custom_call.1} parent=1 // pred_check_branch
      %23 = sbr.rel (0) target = $region9
    $region8: #{tpu_custom_call.1} parent=1 // pred_region
      %s25 = ssub.s32 256, 256
      %26 = vsyncadd [#allocation6], %s25
      %s27 = sshll.u32 [#allocation5], 4
      %s28 = int_to_ptr.vmem [resolvable:$true] %s27
      %33 = dma.hbm_to_vmem [thread:$0]  %s1, 256, %s28, [#allocation6], 128, 128, 8
    $region9: #{tpu_custom_call.1} parent=1 // pred_fallthru
      _
    // Predicated region
    $region10: #{tpu_custom_call.1} parent=1 // pred_check
      _
    $region11: #{tpu_custom_call.1} parent=1 // pred_check_branch
      %35 = sbr.rel (0) target = $region13
    $region12: #{tpu_custom_call.1} parent=1 // pred_region
      %36 = dma.done [#allocation3], 256
    $region13: #{tpu_custom_call.1} parent=1 // pred_fallthru
      _
    // Predicated region
    $region14: #{tpu_custom_call.1} parent=1 // pred_check
      _
    $region15: #{tpu_custom_call.1} parent=1 // pred_check_branch
      %38 = sbr.rel (0) target = $region17
    $region16: #{tpu_custom_call.1} parent=1 // pred_region
      %39 = dma.done [#allocation6], 256
    $region17: #{tpu_custom_call.1} parent=1 // pred_fallthru
      _
    %p40 = scmp.eq.s32.totalorder 0, 0
    // Predicated region
    $region18: #{tpu_custom_call.1} parent=1 // pred_check
      %p41 = pneg %p40
    $region19: #{tpu_custom_call.1} parent=1 // pred_check_branch
      %43 = sbr.rel (%p41) target = $region21
    $region20: #{tpu_custom_call.1} parent=1 // pred_region
      %44 = vst [vmem:[#allocation7] sm:$0xff] 0.0
      %45 = vst [vmem:[#allocation7 + $0x8] sm:$0xff] 0.0
    $region21: #{tpu_custom_call.1} parent=1 // pred_fallthru
      _
    %v46 = vld [vmem:[#allocation2] sm:$0xff]
    %v47 = vld [vmem:[#allocation2 + $0x8] sm:$0xff]
    %v48 = vld [vmem:[#allocation5] sm:$0xff]
    %v49 = vld [vmem:[#allocation5 + $0x8] sm:$0xff]
    %vm50 = vcmp.eq.f32.partialorder %v48, 1.0
    %vm51 = vcmp.eq.f32.partialorder %v49, 1.0
    %v52 = vsub.f32 1.0, %v46
    %v53 = vsub.f32 1.0, %v47
    %v54 = vsel %vm50, %v46, %v52
    %v55 = vsel %vm51, %v47, %v53
    %v56 = vlog2.pop %v54
    %v57 = vmul.f32 %v56, 0.6931472
    %v58 = vlog2.pop %v55
    %v59 = vmul.f32 %v58, 0.6931472
    %v60 = vsel %vm50, %v52, %v46
    %v61 = vsel %vm51, %v53, %v47
    %v62 = vmul.f32 %v60, %v60
    %v63 = vmul.f32 %v61, %v61
    %v64 = vsub.f32 1.0, %v48
    %v65 = vsub.f32 1.0, %v49
    %v66 = vmul.f32 %v64, %v64
    %v67 = vmul.f32 %v65, %v65
    %v68 = vmul.f32 %v66, %v66
    %v69 = vmul.f32 %v67, %v67
    %vm70 = vcmp.lt.f32.partialorder %v48, 1.0
    %vm71 = vcmp.lt.f32.partialorder %v49, 1.0
    %v72 = vsel %vm70, %v68, 0.0
    %v73 = vsel %vm71, %v69, 0.0
    %v74 = vsel %vm50, 1.0, %v72
    %v75 = vsel %vm51, 1.0, %v73
    %v76 = vsel %vm50, 1, 0
    %v77 = vsel %vm51, 1, 0
    %v78 = vcvt.s32.f32 %v76
    %v79 = vcvt.s32.f32 %v77
    %v80 = vmul.f32 %v57, %v62
    %v81 = vmul.f32 %v59, %v63
    %v82 = vmul.f32 %v80, %v74
    %v83 = vmul.f32 %v81, %v75
    %v84 = vld [vmem:[#allocation7] sm:$0xff]
    %v85 = vadd.f32 %v82, %v83
    %v86 = vadd.f32 %v84, %v85
    %87 = vst [vmem:[#allocation7] sm:$0xff] %v86
    %s88 = scalar_lea.vmem [#allocation7], 8
    %v89 = vld [vmem:[%s88] sm:$0xff]
    %v90 = vadd.f32 %v78, %v79
    %v91 = vadd.f32 %v89, %v90
    %92 = vst [vmem:[%s88] sm:$0xff] %v91
    // Predicated region
    $region22: #{tpu_custom_call.1} parent=1 // pred_check
      _
    $region23: #{tpu_custom_call.1} parent=1 // pred_check_branch
      %94 = sbr.rel (0) target = $region25
    $region24: #{tpu_custom_call.1} parent=1 // pred_region
      %s96 = ssub.s32 256, 256
      %97 = vsyncadd [#allocation4], %s96
      %s98 = sshll.u32 [#allocation7], 4
      %s99 = int_to_ptr.vmem [resolvable:$true] %s98
      %104 = dma.vmem_to_hbm [thread:$0]  %s99, 256, %s2, [#allocation4], 128, 128, 8
    $region25: #{tpu_custom_call.1} parent=1 // pred_fallthru
      _
    // Predicated region
    $region26: #{tpu_custom_call.1} parent=1 // pred_check
      _
    $region27: #{tpu_custom_call.1} parent=1 // pred_check_branch
      %106 = sbr.rel (0) target = $region29
    $region28: #{tpu_custom_call.1} parent=1 // pred_region
      %107 = dma.done [#allocation4], 256
    $region29: #{tpu_custom_call.1} parent=1 // pred_fallthru
      _
    %108 = vsyncpa [#allocation3], 1
    %109 = vsyncpa [#allocation6], 1
    %110 = vsyncpa [#allocation4], 1

</llo_original>
